<compile_context>
chip_gen: v7x
topology: tpu7x:2x2x1
jax: 0.10.0
libtpu: 0.0.40
codegen_flags: <defaults>
</compile_context>

<pallas_src>
import functools
import math

import jax
import jax.numpy as jnp
from jax.experimental import pallas as pl
from jax.experimental.pallas import tpu as pltpu

LANE = 128  # TPU lane width


def _round_up(x, m):
    return ((x + m - 1) // m) * m


def _leaky_relu(v):
    # nn.LeakyReLU default negative_slope = 0.01; max form = 2 VALU ops/elem.
    return jnp.maximum(v, 0.01 * v)


def _policy_kernel(x_ref, w1_ref, b1_ref, wh1_ref, bh1_ref, wh2_ref, bh2_ref,
                   out_ref):
    # Matmul operands in bf16, f32 accumulation; biases + elementwise in f32.
    x = x_ref[...].astype(jnp.bfloat16)

    # shared_net: Linear -> LeakyReLU   ([TILE_B, in] @ [in, Hp])
    shared = _leaky_relu(
        jnp.dot(x, w1_ref[...], preferred_element_type=jnp.float32)
        + b1_ref[...]
    )

    # fused head hidden layers:  [Wm1 | Ws1]   ([TILE_B, Hp] @ [Hp, H2p])
    h = _leaky_relu(
        jnp.dot(shared.astype(jnp.bfloat16), wh1_ref[...],
                preferred_element_type=jnp.float32)
        + bh1_ref[...]
    )

    # fused head output layers: block-diag(Wm2, Ws2)  ([TILE_B, H2p] @ [H2p, Op])
    y = (jnp.dot(h.astype(jnp.bfloat16), wh2_ref[...],
                 preferred_element_type=jnp.float32)
         + bh2_ref[...])

    # Raw pre-activations; tanh/softplus applied on the sliced views outside.
    out_ref[...] = y.astype(out_ref.dtype)


def gaussian_gradient_policy(state, packed, *, tile_b=1024):
    """state: [B, in_features] f32.  packed: dict from prepare_params()."""
    B, in_features = state.shape
    out_features = packed["out_features"]
    Op = packed["bh2p"].shape[1]

    # Batch tiling: multiple of 8 (f32 sublane), no larger than the batch.
    tile = _round_up(min(tile_b, _round_up(B, 8)), 8)
    # Ensure >=2 grid steps when the batch allows it so both v7x TensorCores
    # get work under dimension_semantics=("parallel",).
    if pl.cdiv(B, tile) < 2 and B > 8:
        tile = _round_up(pl.cdiv(B, 2), 8)

    grid = (pl.cdiv(B, tile),)          # partial last block handled by Pallas
    const2 = lambda i: (0, 0)           # weights/biases resident across steps

    args = (state, packed["w1p"], packed["b1p"], packed["wh1p"],
            packed["bh1p"], packed["wh2p"], packed["bh2p"])

    out = pl.pallas_call(
        _policy_kernel,
        out_shape=jax.ShapeDtypeStruct((B, Op), jnp.float32),
        grid=grid,
        in_specs=[
            pl.BlockSpec((tile, in_features), lambda i: (i, 0)),
            pl.BlockSpec(packed["w1p"].shape, const2),
            pl.BlockSpec(packed["b1p"].shape, const2),
            pl.BlockSpec(packed["wh1p"].shape, const2),
            pl.BlockSpec(packed["bh1p"].shape, const2),
            pl.BlockSpec(packed["wh2p"].shape, const2),
            pl.BlockSpec(packed["bh2p"].shape, const2),
        ],
        out_specs=pl.BlockSpec((tile, Op), lambda i: (i, 0)),
        compiler_params=pltpu.CompilerParams(
            dimension_semantics=("parallel",)),
    )(*args)

    # One contiguous lane slice, then activations on the tiny real payload.
    # TODO(synk): if profiling at very large B shows writeback-bound, pack
    # several batch rows' 2*out values per 128-lane output row in-kernel.
    y = out[:, :2 * out_features]
    means = jnp.tanh(y[:, :out_features])
    stds = jax.nn.softplus(y[:, out_features:])
    return means, stds


# ----------------------------------------------------------------------------
# Parameter construction (PyTorch-like init) and host-side packing/padding.
# ----------------------------------------------------------------------------

def _init_linear(key, fan_in, fan_out):
    """Mimics PyTorch nn.Linear default init (uniform +/- 1/sqrt(fan_in)).
    Weight returned pre-transposed as [in, out]; bias as [1, out]."""
    kw, kb = jax.random.split(key)
    bound = 1.0 / math.sqrt(fan_in)
    w = jax.random.uniform(kw, (fan_in, fan_out), jnp.float32, -bound, bound)
    b = jax.random.uniform(kb, (1, fan_out), jnp.float32, -bound, bound)
    return w, b


def make_params(key, in_features, out_features, hidden_size):
    keys = jax.random.split(key, 5)
    w1, b1 = _init_linear(keys[0], in_features, hidden_size)
    wm1, bm1 = _init_linear(keys[1], hidden_size, hidden_size)
    wm2, bm2 = _init_linear(keys[2], hidden_size, out_features)
    ws1, bs1 = _init_linear(keys[3], hidden_size, hidden_size)
    ws2, bs2 = _init_linear(keys[4], hidden_size, out_features)
    return dict(w1=w1, b1=b1, wm1=wm1, bm1=bm1, wm2=wm2, bm2=bm2,
                ws1=ws1, bs1=bs1, ws2=ws2, bs2=bs2)


def prepare_params(p, in_features, out_features, hidden_size):
    """One-time host-side fusion + lane padding + bf16 cast of the weights."""
    H = hidden_size
    Hp = _round_up(H, LANE)                  # padded shared width
    H2p = _round_up(2 * H, LANE)             # padded fused head-hidden width
    Op = _round_up(2 * out_features, LANE)   # padded fused output width

    # shared layer, lane-padded.
    w1p = jnp.zeros((in_features, Hp), jnp.float32).at[:, :H].set(p["w1"])
    b1p = jnp.zeros((1, Hp), jnp.float32).at[:, :H].set(p["b1"])

    # fused head hidden layer:  shared @ [Wm1 | Ws1]
    wh1p = (jnp.zeros((Hp, H2p), jnp.float32)
            .at[:H, :H].set(p["wm1"])
            .at[:H, H:2 * H].set(p["ws1"]))
    bh1p = (jnp.zeros((1, H2p), jnp.float32)
            .at[:, :H].set(p["bm1"])
            .at[:, H:2 * H].set(p["bs1"]))

    # fused head output layer: block-diag(Wm2, Ws2)
    wh2p = (jnp.zeros((H2p, Op), jnp.float32)
            .at[:H, :out_features].set(p["wm2"])
            .at[H:2 * H, out_features:2 * out_features].set(p["ws2"]))
    bh2p = (jnp.zeros((1, Op), jnp.float32)
            .at[:, :out_features].set(p["bm2"])
            .at[:, out_features:2 * out_features].set(p["bs2"]))

    # bf16 matmul operands (f32 accumulation in-kernel); biases stay f32.
    return dict(w1p=w1p.astype(jnp.bfloat16), b1p=b1p,
                wh1p=wh1p.astype(jnp.bfloat16), bh1p=bh1p,
                wh2p=wh2p.astype(jnp.bfloat16), bh2p=bh2p,
                out_features=out_features)


def _reference(state, p):
    """Pure-JAX f32 reference for correctness checking (unfused raw params)."""
    def leaky(v):
        return jnp.where(v > 0, v, 0.01 * v)
    shared = leaky(state @ p["w1"] + p["b1"])
    means = jnp.tanh(leaky(shared @ p["wm1"] + p["bm1"]) @ p["wm2"] + p["bm2"])
    log_stds = leaky(shared @ p["ws1"] + p["bs1"]) @ p["ws2"] + p["bs2"]
    return means, jax.nn.softplus(log_stds)


if __name__ == "__main__":
    in_features, out_features, hidden_size = 16, 4, 32
    batch = 8

    key = jax.random.PRNGKey(0)
    k_state, k_params = jax.random.split(key)
    state = jax.random.normal(k_state, (batch, in_features), jnp.float32)
    raw = make_params(k_params, in_features, out_features, hidden_size)
    packed = prepare_params(raw, in_features, out_features, hidden_size)

    means, stds = gaussian_gradient_policy(state, packed)
    jax.block_until_ready((means, stds))

    ref_means, ref_stds = _reference(state, raw)
    assert means.shape == (batch, out_features)
    assert stds.shape == (batch, out_features)
    # Tolerance loosened for bf16 matmul operands (f32 accumulation).
    assert jnp.allclose(means, ref_means, atol=2e-2, rtol=2e-2)
    assert jnp.allclose(stds, ref_stds, atol=2e-2, rtol=2e-2)
    assert bool(jnp.all(stds > 0))

    print("KERNEL_OK")
</pallas_src>

<mosaic_0001>
module attributes {stable_mosaic.version = 11 : i64} {
  func.func @_policy_kernel(%arg0: i32, %arg1: memref<8x16xf32, #tpu.memory_space<vmem>>, %arg2: memref<16x128xbf16, #tpu.memory_space<vmem>>, %arg3: memref<1x128xf32, #tpu.memory_space<vmem>>, %arg4: memref<128x128xbf16, #tpu.memory_space<vmem>>, %arg5: memref<1x128xf32, #tpu.memory_space<vmem>>, %arg6: memref<128x128xbf16, #tpu.memory_space<vmem>>, %arg7: memref<1x128xf32, #tpu.memory_space<vmem>>, %arg8: memref<8x128xf32, #tpu.memory_space<vmem>>) attributes {dimension_semantics = [#tpu.dimension_semantics<parallel>], iteration_bounds = array<i64: 1>, scalar_prefetch = 0 : i64, scratch_operands = 0 : i64, tpu.core_type = #tpu.core_type<tc>, window_params = [{transform_indices = @transform_0, window_bounds = array<i64: 8, 16>}, {pipeline_mode = #tpu.pipeline_mode<synchronous>, transform_indices = @transform_1, window_bounds = array<i64: 16, 128>}, {pipeline_mode = #tpu.pipeline_mode<synchronous>, transform_indices = @transform_2, window_bounds = array<i64: 1, 128>}, {pipeline_mode = #tpu.pipeline_mode<synchronous>, transform_indices = @transform_3, window_bounds = array<i64: 128, 128>}, {pipeline_mode = #tpu.pipeline_mode<synchronous>, transform_indices = @transform_4, window_bounds = array<i64: 1, 128>}, {pipeline_mode = #tpu.pipeline_mode<synchronous>, transform_indices = @transform_5, window_bounds = array<i64: 128, 128>}, {pipeline_mode = #tpu.pipeline_mode<synchronous>, transform_indices = @transform_6, window_bounds = array<i64: 1, 128>}, {transform_indices = @transform_7, window_bounds = array<i64: 8, 128>}]} {
    %c0 = arith.constant 0 : index
    %c0_0 = arith.constant 0 : index
    %0 = vector.load %arg1[%c0, %c0_0] : memref<8x16xf32, #tpu.memory_space<vmem>>, vector<8x16xf32>
    %1 = arith.truncf %0 : vector<8x16xf32> to vector<8x16xbf16>
    %c0_1 = arith.constant 0 : index
    %c0_2 = arith.constant 0 : index
    %2 = vector.load %arg2[%c0_1, %c0_2] : memref<16x128xbf16, #tpu.memory_space<vmem>>, vector<16x128xbf16>
    %cst = arith.constant dense<0.000000e+00> : vector<8x128xf32>
    %3 = tpu.matmul %1, %2, %cst {dimension_numbers = #tpu.dot_dimension_numbers<[1], [0], [0], [1], [0, 0, 1, 1], [], []>} : vector<8x16xbf16>, vector<16x128xbf16>, vector<8x128xf32> -> vector<8x128xf32>
    %c0_3 = arith.constant 0 : index
    %c0_4 = arith.constant 0 : index
    %4 = vector.load %arg3[%c0_3, %c0_4] : memref<1x128xf32, #tpu.memory_space<vmem>>, vector<1x128xf32>
    %5 = vector.broadcast %4 : vector<1x128xf32> to vector<8x128xf32>
    %6 = arith.addf %3, %5 : vector<8x128xf32>
    %cst_5 = arith.constant 0.00999999977 : f32
    %7 = vector.broadcast %cst_5 : f32 to vector<8x128xf32>
    %8 = arith.mulf %7, %6 : vector<8x128xf32>
    %9 = arith.maximumf %6, %8 : vector<8x128xf32>
    %10 = arith.truncf %9 : vector<8x128xf32> to vector<8x128xbf16>
    %c0_6 = arith.constant 0 : index
    %c0_7 = arith.constant 0 : index
    %11 = vector.load %arg4[%c0_6, %c0_7] : memref<128x128xbf16, #tpu.memory_space<vmem>>, vector<128x128xbf16>
    %cst_8 = arith.constant dense<0.000000e+00> : vector<8x128xf32>
    %12 = tpu.matmul %10, %11, %cst_8 {dimension_numbers = #tpu.dot_dimension_numbers<[1], [0], [0], [1], [0, 0, 1, 1], [], []>} : vector<8x128xbf16>, vector<128x128xbf16>, vector<8x128xf32> -> vector<8x128xf32>
    %c0_9 = arith.constant 0 : index
    %c0_10 = arith.constant 0 : index
    %13 = vector.load %arg5[%c0_9, %c0_10] : memref<1x128xf32, #tpu.memory_space<vmem>>, vector<1x128xf32>
    %14 = vector.broadcast %13 : vector<1x128xf32> to vector<8x128xf32>
    %15 = arith.addf %12, %14 : vector<8x128xf32>
    %cst_11 = arith.constant 0.00999999977 : f32
    %16 = vector.broadcast %cst_11 : f32 to vector<8x128xf32>
    %17 = arith.mulf %16, %15 : vector<8x128xf32>
    %18 = arith.maximumf %15, %17 : vector<8x128xf32>
    %19 = arith.truncf %18 : vector<8x128xf32> to vector<8x128xbf16>
    %c0_12 = arith.constant 0 : index
    %c0_13 = arith.constant 0 : index
    %20 = vector.load %arg6[%c0_12, %c0_13] : memref<128x128xbf16, #tpu.memory_space<vmem>>, vector<128x128xbf16>
    %cst_14 = arith.constant dense<0.000000e+00> : vector<8x128xf32>
    %21 = tpu.matmul %19, %20, %cst_14 {dimension_numbers = #tpu.dot_dimension_numbers<[1], [0], [0], [1], [0, 0, 1, 1], [], []>} : vector<8x128xbf16>, vector<128x128xbf16>, vector<8x128xf32> -> vector<8x128xf32>
    %c0_15 = arith.constant 0 : index
    %c0_16 = arith.constant 0 : index
    %22 = vector.load %arg7[%c0_15, %c0_16] : memref<1x128xf32, #tpu.memory_space<vmem>>, vector<1x128xf32>
    %23 = vector.broadcast %22 : vector<1x128xf32> to vector<8x128xf32>
    %24 = arith.addf %21, %23 : vector<8x128xf32>
    %c0_17 = arith.constant 0 : index
    %c0_18 = arith.constant 0 : index
    %25 = vector.load %arg8[%c0_17, %c0_18] : memref<8x128xf32, #tpu.memory_space<vmem>>, vector<8x128xf32>
    tpu.vector_store %arg8[%c0_17, %c0_18], %24 {strides = array<i32>} : memref<8x128xf32, #tpu.memory_space<vmem>>, vector<8x128xf32>,
    return
  }
  func.func @transform_0(%arg0: i32) -> (i32, i32) {
    %c0_i32 = arith.constant 0 : i32
    %c0_i32_0 = arith.constant 0 : i32
    return %arg0, %c0_i32 : i32, i32
  }
  func.func @transform_1(%arg0: i32) -> (i32, i32) {
    %c0_i32 = arith.constant 0 : i32
    %c0_i32_0 = arith.constant 0 : i32
    %c0_i32_1 = arith.constant 0 : i32
    return %c0_i32, %c0_i32_0 : i32, i32
  }
  func.func @transform_2(%arg0: i32) -> (i32, i32) {
    %c0_i32 = arith.constant 0 : i32
    %c0_i32_0 = arith.constant 0 : i32
    %c0_i32_1 = arith.constant 0 : i32
    return %c0_i32, %c0_i32_0 : i32, i32
  }
  func.func @transform_3(%arg0: i32) -> (i32, i32) {
    %c0_i32 = arith.constant 0 : i32
    %c0_i32_0 = arith.constant 0 : i32
    %c0_i32_1 = arith.constant 0 : i32
    return %c0_i32, %c0_i32_0 : i32, i32
  }
  func.func @transform_4(%arg0: i32) -> (i32, i32) {
    %c0_i32 = arith.constant 0 : i32
    %c0_i32_0 = arith.constant 0 : i32
    %c0_i32_1 = arith.constant 0 : i32
    return %c0_i32, %c0_i32_0 : i32, i32
  }
  func.func @transform_5(%arg0: i32) -> (i32, i32) {
    %c0_i32 = arith.constant 0 : i32
    %c0_i32_0 = arith.constant 0 : i32
    %c0_i32_1 = arith.constant 0 : i32
    return %c0_i32, %c0_i32_0 : i32, i32
  }
  func.func @transform_6(%arg0: i32) -> (i32, i32) {
    %c0_i32 = arith.constant 0 : i32
    %c0_i32_0 = arith.constant 0 : i32
    %c0_i32_1 = arith.constant 0 : i32
    return %c0_i32, %c0_i32_0 : i32, i32
  }
  func.func @transform_7(%arg0: i32) -> (i32, i32) {
    %c0_i32 = arith.constant 0 : i32
    %c0_i32_0 = arith.constant 0 : i32
    return %arg0, %c0_i32 : i32, i32
  }
}

</mosaic_0001>

<llo_original>
// kernel: tpu_custom_call.1
$region0: #{tpu_custom_call.1}
  #allocation0 [shape = 'u32[]', space=smem, size = 0x4, offset = 0x4, fixed_abs, tag = 'smem constant byte address 0x4 - core index']
  #allocation1 [shape = 'u32[144,128]{1,0:T(1,128)}', space=vmem, size = 0x12000, scoped, tag = 'internal scratch']
  %s0 = inlined_call_operand.hbm [shape: f32[8,16], index: 0, kind: input, shape index: {}]
  %s1 = inlined_call_operand.hbm [shape: bf16[16,128], index: 1, kind: input, shape index: {}]
  %s2 = inlined_call_operand.vmem [shape: f32[1,128], index: 2, kind: input, shape index: {}]
  %s3 = inlined_call_operand.hbm [shape: bf16[128,128], index: 3, kind: input, shape index: {}]
  %s4 = inlined_call_operand.vmem [shape: f32[1,128], index: 4, kind: input, shape index: {}]
  %s5 = inlined_call_operand.hbm [shape: bf16[128,128], index: 5, kind: input, shape index: {}]
  %s6 = inlined_call_operand.vmem [shape: f32[1,128], index: 6, kind: input, shape index: {}]
  %s7 = inlined_call_operand.hbm [shape: f32[8,128], index: 7, kind: output, shape index: {}]
  %s8 = sld [smem:[#allocation0]]
  $region54: #{tpu_custom_call.1} parent=0
    _
  %s10 = ssub.s32 1, %s8
  %s11 = scalar_select 0, %s10, %s8
  $region1: #{tpu_custom_call.1} parent=0
    #allocation2 [shape = 'u8[4096]{0}', space=vmem, size = 0x1000, scoped, tag = 'input window, operand 0, single buffered']
    #allocation3 [shape = 's32[1]{0}', space=sflag, size = 0x4, scoped, tag = 'scoped memory for tpu_custom_call.1']
    #allocation4 [shape = 's32[1]{0}', space=sflag, size = 0x4, scoped, tag = 'scoped memory for tpu_custom_call.1']
    #allocation5 [shape = 'u8[4096]{0}', space=vmem, size = 0x1000, scoped, tag = 'input window, operand 1, single buffered']
    #allocation6 [shape = 's32[1]{0}', space=sflag, size = 0x4, scoped, tag = 'scoped memory for tpu_custom_call.1']
    #allocation7 [shape = 'u8[32768]{0}', space=vmem, size = 0x8000, scoped, tag = 'input window, operand 3, single buffered']
    #allocation8 [shape = 'u8[32768]{0}', space=vmem, size = 0x8000, scoped, tag = 'input window, operand 5, single buffered']
    #allocation9 [shape = 's32[1]{0}', space=sflag, size = 0x4, scoped, tag = 'scoped memory for tpu_custom_call.1']
    #allocation10 [shape = 'u8[4096]{0}', space=vmem, size = 0x1000, scoped, tag = 'output window, operand 0, single buffered']
    %12 = vsyncpa [#allocation3], 0
    %13 = vsyncpa [#allocation6], 0
    %14 = vsyncpa [#allocation9], 0
    %15 = vsyncpa [#allocation4], 0
    // Predicated region
    $region2: #{tpu_custom_call.1} parent=1 // pred_check
      _
    $region3: #{tpu_custom_call.1} parent=1 // pred_check_branch
      %17 = sbr.rel (0) target = $region5
    $region4: #{tpu_custom_call.1} parent=1 // pred_region
      %s19 = ssub.s32 128, 128
      %20 = vsyncadd [#allocation3], %s19
      %s22 = sshll.u32 [#allocation2], 4
      %s23 = int_to_ptr.vmem [resolvable:$true] %s22
      %25 = dma.hbm_to_vmem [thread:$0]  %s0, 128, %s23, [#allocation3]
    $region5: #{tpu_custom_call.1} parent=1 // pred_fallthru
      _
    // Predicated region
    $region6: #{tpu_custom_call.1} parent=1 // pred_check
      _
    $region7: #{tpu_custom_call.1} parent=1 // pred_check_branch
      %27 = sbr.rel (0) target = $region9
    $region8: #{tpu_custom_call.1} parent=1 // pred_region
      %s29 = ssub.s32 128, 128
      %30 = vsyncadd [#allocation6], %s29
      %s31 = sshll.u32 [#allocation5], 4
      %s32 = int_to_ptr.vmem [resolvable:$true] %s31
      %37 = dma.hbm_to_vmem [thread:$0]  %s1, 128, %s32, [#allocation6], 64, 64, 4
    $region9: #{tpu_custom_call.1} parent=1 // pred_fallthru
      _
    // Predicated region
    $region10: #{tpu_custom_call.1} parent=1 // pred_check
      _
    $region11: #{tpu_custom_call.1} parent=1 // pred_check_branch
      %39 = sbr.rel (0) target = $region13
    $region12: #{tpu_custom_call.1} parent=1 // pred_region
      _
    $region13: #{tpu_custom_call.1} parent=1 // pred_fallthru
      _
    // Predicated region
    $region14: #{tpu_custom_call.1} parent=1 // pred_check
      _
    $region15: #{tpu_custom_call.1} parent=1 // pred_check_branch
      %41 = sbr.rel (0) target = $region17
    $region16: #{tpu_custom_call.1} parent=1 // pred_region
      %s43 = ssub.s32 1024, 1024
      %44 = vsyncadd [#allocation6], %s43
      %s45 = sshll.u32 [#allocation7], 4
      %s46 = int_to_ptr.vmem [resolvable:$true] %s45
      %51 = dma.hbm_to_vmem [thread:$0]  %s3, 1024, %s46, [#allocation6], 64, 64, 4
    $region17: #{tpu_custom_call.1} parent=1 // pred_fallthru
      _
    // Predicated region
    $region18: #{tpu_custom_call.1} parent=1 // pred_check
      _
    $region19: #{tpu_custom_call.1} parent=1 // pred_check_branch
      %53 = sbr.rel (0) target = $region21
    $region20: #{tpu_custom_call.1} parent=1 // pred_region
      _
    $region21: #{tpu_custom_call.1} parent=1 // pred_fallthru
      _
    // Predicated region
    $region22: #{tpu_custom_call.1} parent=1 // pred_check
      _
    $region23: #{tpu_custom_call.1} parent=1 // pred_check_branch
      %55 = sbr.rel (0) target = $region25
    $region24: #{tpu_custom_call.1} parent=1 // pred_region
      %s57 = ssub.s32 1024, 1024
      %58 = vsyncadd [#allocation9], %s57
      %s59 = sshll.u32 [#allocation8], 4
      %s60 = int_to_ptr.vmem [resolvable:$true] %s59
      %65 = dma.hbm_to_vmem [thread:$0]  %s5, 1024, %s60, [#allocation9], 64, 64, 4
    $region25: #{tpu_custom_call.1} parent=1 // pred_fallthru
      _
    // Predicated region
    $region26: #{tpu_custom_call.1} parent=1 // pred_check
      _
    $region27: #{tpu_custom_call.1} parent=1 // pred_check_branch
      %67 = sbr.rel (0) target = $region29
    $region28: #{tpu_custom_call.1} parent=1 // pred_region
      _
    $region29: #{tpu_custom_call.1} parent=1 // pred_fallthru
      _
    // Predicated region
    $region30: #{tpu_custom_call.1} parent=1 // pred_check
      _
    $region31: #{tpu_custom_call.1} parent=1 // pred_check_branch
      %69 = sbr.rel (0) target = $region33
    $region32: #{tpu_custom_call.1} parent=1 // pred_region
      %70 = dma.done [#allocation3], 128
    $region33: #{tpu_custom_call.1} parent=1 // pred_fallthru
      _
    // Predicated region
    $region34: #{tpu_custom_call.1} parent=1 // pred_check
      _
    $region35: #{tpu_custom_call.1} parent=1 // pred_check_branch
      %72 = sbr.rel (0) target = $region37
    $region36: #{tpu_custom_call.1} parent=1 // pred_region
      %73 = dma.done [#allocation6], 128
    $region37: #{tpu_custom_call.1} parent=1 // pred_fallthru
      _
    // Predicated region
    $region38: #{tpu_custom_call.1} parent=1 // pred_check
      _
    $region39: #{tpu_custom_call.1} parent=1 // pred_check_branch
      %75 = sbr.rel (0) target = $region41
    $region40: #{tpu_custom_call.1} parent=1 // pred_region
      %76 = dma.done [#allocation6], 1024
    $region41: #{tpu_custom_call.1} parent=1 // pred_fallthru
      _
    // Predicated region
    $region42: #{tpu_custom_call.1} parent=1 // pred_check
      _
    $region43: #{tpu_custom_call.1} parent=1 // pred_check_branch
      %78 = sbr.rel (0) target = $region45
    $region44: #{tpu_custom_call.1} parent=1 // pred_region
      %79 = dma.done [#allocation9], 1024
    $region45: #{tpu_custom_call.1} parent=1 // pred_fallthru
      _
    %v81 = vld [vmem:[#allocation2] sm:$0xff]
    %v82 = vpack.c.bf16 %v81, %v81
    %v83 = vld [vmem:[#allocation5] sm:$0xf]
    %v84 = vld [vmem:[#allocation5 + $0x4] sm:$0xf]
    %v85 = vld [vmem:[%s2] sm:$0x1]
    %v87 = vlaneseq
    %v88 = vshrl.u32 %v87, 7
    %v89 = vsub.s32 0, %v88
    %v90 = vrot.slane %v85, %v89
    %v94 = vunpack.c.l.b16 %v83
    %v95 = vunpack.c.l.b16 %v84
    %v96 = vpack.c.b16 %v95, %v94
    %vm98 = vcmask 130048
    %v100 = vsel %vm98, %v82, 0
    %102 = vmatprep.subr.bf16.mxu0 0
    %103 = vmatpush1.bf16.msra.mxu0 %v96
    %104 = vmatprep.subr.bf16.mxu0 0
    %105 = vmatpush1.bf16.msra.mxu0 0
    %106 = vmatprep.subr.bf16.mxu0 0
    %107 = vmatpush1.bf16.msra.mxu0 0
    %108 = vmatprep.subr.bf16.mxu0 0
    %109 = vmatpush1.bf16.msra.mxu0 0
    %110 = vmatprep.subr.bf16.mxu0 0
    %111 = vmatpush1.bf16.msra.mxu0 0
    %112 = vmatprep.subr.bf16.mxu0 0
    %113 = vmatpush1.bf16.msra.mxu0 0
    %114 = vmatprep.subr.bf16.mxu0 0
    %115 = vmatpush1.bf16.msra.mxu0 0
    %116 = vmatprep.subr.bf16.mxu0 0
    %117 = vmatpush1.bf16.msra.mxu0 0
    %118 = vmatprep.subr.bf16.mxu0 0
    %119 = vmatpush1.bf16.msra.mxu0 0
    %120 = vmatprep.subr.bf16.mxu0 0
    %121 = vmatpush1.bf16.msra.mxu0 0
    %122 = vmatprep.subr.bf16.mxu0 0
    %123 = vmatpush1.bf16.msra.mxu0 0
    %124 = vmatprep.subr.bf16.mxu0 0
    %125 = vmatpush1.bf16.msra.mxu0 0
    %126 = vmatprep.subr.bf16.mxu0 0
    %127 = vmatpush1.bf16.msra.mxu0 0
    %128 = vmatprep.subr.bf16.mxu0 0
    %129 = vmatpush1.bf16.msra.mxu0 0
    %130 = vmatprep.subr.bf16.mxu0 0
    %131 = vmatpush1.bf16.msra.mxu0 0
    %132 = vmatprep.subr.bf16.mxu0 0
    %133 = vmatpush1.bf16.msra.mxu0 0
    %134 = vmatprep.mubr.bf16.mxu0 0
    %135 = vmatmul.mubr.bf16.gmra.mrb[0].mxu0 %v100
    %v136 = vpop.f32.mrb[0].mxu0
    %v137 = vadd.f32 %v90, %v136
    %v138 = vpop.f32.mrb[0].mxu0
    %v139 = vpop.f32.mrb[0].mxu0
    %v140 = vpop.f32.mrb[0].mxu0
    %141 = vdwg.mxu0
    %v142 = vmul.f32 %v137, 0.01
    %v143 = vmax.f32 %v137, %v142
    %v144 = vpack.c.bf16 %v143, %v143
    %v145 = vld [vmem:[#allocation7] sm:$0xf]
    %v146 = vld [vmem:[#allocation7 + $0x4] sm:$0xf]
    %v147 = vld [vmem:[#allocation7 + $0x8] sm:$0xf]
    %v148 = vld [vmem:[#allocation7 + $0xc] sm:$0xf]
    %v149 = vld [vmem:[#allocation7 + $0x10] sm:$0xf]
    %v150 = vld [vmem:[#allocation7 + $0x14] sm:$0xf]
    %v151 = vld [vmem:[#allocation7 + $0x18] sm:$0xf]
    %v152 = vld [vmem:[#allocation7 + $0x1c] sm:$0xf]
    %v153 = vld [vmem:[#allocation7 + $0x20] sm:$0xf]
    %v154 = vld [vmem:[#allocation7 + $0x24] sm:$0xf]
    %v155 = vld [vmem:[#allocation7 + $0x28] sm:$0xf]
    %v156 = vld [vmem:[#allocation7 + $0x2c] sm:$0xf]
    %v157 = vld [vmem:[#allocation7 + $0x30] sm:$0xf]
    %v158 = vld [vmem:[#allocation7 + $0x34] sm:$0xf]
    %v159 = vld [vmem:[#allocation7 + $0x38] sm:$0xf]
    %v160 = vld [vmem:[#allocation7 + $0x3c] sm:$0xf]
    %v161 = vld [vmem:[%s4] sm:$0x1]
    %v163 = vlaneseq
    %v164 = vshrl.u32 %v163, 7
    %v165 = vsub.s32 0, %v164
    %v166 = vrot.slane %v161, %v165
    %v184 = vunpack.c.l.b16 %v145
    %v185 = vunpack.c.l.b16 %v146
    %v186 = vunpack.c.l.b16 %v147
    %v187 = vunpack.c.l.b16 %v148
    %v188 = vunpack.c.l.b16 %v149
    %v189 = vunpack.c.l.b16 %v150
    %v190 = vunpack.c.l.b16 %v151
    %v191 = vunpack.c.l.b16 %v152
    %v192 = vunpack.c.l.b16 %v153
    %v193 = vunpack.c.l.b16 %v154
    %v194 = vunpack.c.l.b16 %v155
    %v195 = vunpack.c.l.b16 %v156
    %v196 = vunpack.c.l.b16 %v157
    %v197 = vunpack.c.l.b16 %v158
    %v198 = vunpack.c.l.b16 %v159
    %v199 = vunpack.c.l.b16 %v160
    %v200 = vpack.c.b16 %v185, %v184
    %v201 = vpack.c.b16 %v187, %v186
    %v202 = vpack.c.b16 %v189, %v188
    %v203 = vpack.c.b16 %v191, %v190
    %v204 = vpack.c.b16 %v193, %v192
    %v205 = vpack.c.b16 %v195, %v194
    %v206 = vpack.c.b16 %v197, %v196
    %v207 = vpack.c.b16 %v199, %v198
    %216 = vmatprep.subr.bf16.mxu0 0
    %217 = vmatpush1.bf16.msra.mxu0 %v200
    %218 = vmatprep.subr.bf16.mxu0 0
    %219 = vmatpush1.bf16.msra.mxu0 %v201
    %220 = vmatprep.subr.bf16.mxu0 0
    %221 = vmatpush1.bf16.msra.mxu0 %v202
    %222 = vmatprep.subr.bf16.mxu0 0
    %223 = vmatpush1.bf16.msra.mxu0 %v203
    %224 = vmatprep.subr.bf16.mxu0 0
    %225 = vmatpush1.bf16.msra.mxu0 %v204
    %226 = vmatprep.subr.bf16.mxu0 0
    %227 = vmatpush1.bf16.msra.mxu0 %v205
    %228 = vmatprep.subr.bf16.mxu0 0
    %229 = vmatpush1.bf16.msra.mxu0 %v206
    %230 = vmatprep.subr.bf16.mxu0 0
    %231 = vmatpush1.bf16.msra.mxu0 %v207
    %232 = vmatprep.subr.bf16.mxu0 0
    %233 = vmatpush1.bf16.msra.mxu0 0
    %234 = vmatprep.subr.bf16.mxu0 0
    %235 = vmatpush1.bf16.msra.mxu0 0
    %236 = vmatprep.subr.bf16.mxu0 0
    %237 = vmatpush1.bf16.msra.mxu0 0
    %238 = vmatprep.subr.bf16.mxu0 0
    %239 = vmatpush1.bf16.msra.mxu0 0
    %240 = vmatprep.subr.bf16.mxu0 0
    %241 = vmatpush1.bf16.msra.mxu0 0
    %242 = vmatprep.subr.bf16.mxu0 0
    %243 = vmatpush1.bf16.msra.mxu0 0
    %244 = vmatprep.subr.bf16.mxu0 0
    %245 = vmatpush1.bf16.msra.mxu0 0
    %246 = vmatprep.subr.bf16.mxu0 0
    %247 = vmatpush1.bf16.msra.mxu0 0
    %248 = vmatprep.mubr.bf16.mxu0 0
    %249 = vmatmul.mubr.bf16.gmra.mrb[0].mxu0 %v144
    %v250 = vpop.f32.mrb[0].mxu0
    %v251 = vadd.f32 %v166, %v250
    %v252 = vpop.f32.mrb[0].mxu0
    %v253 = vpop.f32.mrb[0].mxu0
    %v254 = vpop.f32.mrb[0].mxu0
    %255 = vdwg.mxu0
    %v256 = vmul.f32 %v251, 0.01
    %v257 = vmax.f32 %v251, %v256
    %v258 = vpack.c.bf16 %v257, %v257
    %v259 = vld [vmem:[#allocation8] sm:$0xf]
    %v260 = vld [vmem:[#allocation8 + $0x4] sm:$0xf]
    %v261 = vld [vmem:[#allocation8 + $0x8] sm:$0xf]
    %v262 = vld [vmem:[#allocation8 + $0xc] sm:$0xf]
    %v263 = vld [vmem:[#allocation8 + $0x10] sm:$0xf]
    %v264 = vld [vmem:[#allocation8 + $0x14] sm:$0xf]
    %v265 = vld [vmem:[#allocation8 + $0x18] sm:$0xf]
    %v266 = vld [vmem:[#allocation8 + $0x1c] sm:$0xf]
    %v267 = vld [vmem:[#allocation8 + $0x20] sm:$0xf]
    %v268 = vld [vmem:[#allocation8 + $0x24] sm:$0xf]
    %v269 = vld [vmem:[#allocation8 + $0x28] sm:$0xf]
    %v270 = vld [vmem:[#allocation8 + $0x2c] sm:$0xf]
    %v271 = vld [vmem:[#allocation8 + $0x30] sm:$0xf]
    %v272 = vld [vmem:[#allocation8 + $0x34] sm:$0xf]
    %v273 = vld [vmem:[#allocation8 + $0x38] sm:$0xf]
    %v274 = vld [vmem:[#allocation8 + $0x3c] sm:$0xf]
    %v275 = vld [vmem:[%s6] sm:$0x1]
    %v277 = vlaneseq
    %v278 = vshrl.u32 %v277, 7
    %v279 = vsub.s32 0, %v278
    %v280 = vrot.slane %v275, %v279
    %v298 = vunpack.c.l.b16 %v259
    %v299 = vunpack.c.l.b16 %v260
    %v300 = vunpack.c.l.b16 %v261
    %v301 = vunpack.c.l.b16 %v262
    %v302 = vunpack.c.l.b16 %v263
    %v303 = vunpack.c.l.b16 %v264
    %v304 = vunpack.c.l.b16 %v265
    %v305 = vunpack.c.l.b16 %v266
    %v306 = vunpack.c.l.b16 %v267
    %v307 = vunpack.c.l.b16 %v268
    %v308 = vunpack.c.l.b16 %v269
    %v309 = vunpack.c.l.b16 %v270
    %v310 = vunpack.c.l.b16 %v271
    %v311 = vunpack.c.l.b16 %v272
    %v312 = vunpack.c.l.b16 %v273
    %v313 = vunpack.c.l.b16 %v274
    %v314 = vpack.c.b16 %v299, %v298
    %v315 = vpack.c.b16 %v301, %v300
    %v316 = vpack.c.b16 %v303, %v302
    %v317 = vpack.c.b16 %v305, %v304
    %v318 = vpack.c.b16 %v307, %v306
    %v319 = vpack.c.b16 %v309, %v308
    %v320 = vpack.c.b16 %v311, %v310
    %v321 = vpack.c.b16 %v313, %v312
    %330 = vmatprep.subr.bf16.mxu0 0
    %331 = vmatpush1.bf16.msra.mxu0 %v314
    %332 = vmatprep.subr.bf16.mxu0 0
    %333 = vmatpush1.bf16.msra.mxu0 %v315
    %334 = vmatprep.subr.bf16.mxu0 0
    %335 = vmatpush1.bf16.msra.mxu0 %v316
    %336 = vmatprep.subr.bf16.mxu0 0
    %337 = vmatpush1.bf16.msra.mxu0 %v317
    %338 = vmatprep.subr.bf16.mxu0 0
    %339 = vmatpush1.bf16.msra.mxu0 %v318
    %340 = vmatprep.subr.bf16.mxu0 0
    %341 = vmatpush1.bf16.msra.mxu0 %v319
    %342 = vmatprep.subr.bf16.mxu0 0
    %343 = vmatpush1.bf16.msra.mxu0 %v320
    %344 = vmatprep.subr.bf16.mxu0 0
    %345 = vmatpush1.bf16.msra.mxu0 %v321
    %346 = vmatprep.subr.bf16.mxu0 0
    %347 = vmatpush1.bf16.msra.mxu0 0
    %348 = vmatprep.subr.bf16.mxu0 0
    %349 = vmatpush1.bf16.msra.mxu0 0
    %350 = vmatprep.subr.bf16.mxu0 0
    %351 = vmatpush1.bf16.msra.mxu0 0
    %352 = vmatprep.subr.bf16.mxu0 0
    %353 = vmatpush1.bf16.msra.mxu0 0
    %354 = vmatprep.subr.bf16.mxu0 0
    %355 = vmatpush1.bf16.msra.mxu0 0
    %356 = vmatprep.subr.bf16.mxu0 0
    %357 = vmatpush1.bf16.msra.mxu0 0
    %358 = vmatprep.subr.bf16.mxu0 0
    %359 = vmatpush1.bf16.msra.mxu0 0
    %360 = vmatprep.subr.bf16.mxu0 0
    %361 = vmatpush1.bf16.msra.mxu0 0
    %362 = vmatprep.mubr.bf16.mxu0 0
    %363 = vmatmul.mubr.bf16.gmra.mrb[0].mxu0 %v258
    %v364 = vpop.f32.mrb[0].mxu0
    %v365 = vadd.f32 %v280, %v364
    %v366 = vpop.f32.mrb[0].mxu0
    %v367 = vpop.f32.mrb[0].mxu0
    %v368 = vpop.f32.mrb[0].mxu0
    %369 = vdwg.mxu0
    %370 = vst [vmem:[#allocation10] sm:$0xff] %v365
    // Predicated region
    $region46: #{tpu_custom_call.1} parent=1 // pred_check
      _
    $region47: #{tpu_custom_call.1} parent=1 // pred_check_branch
      %372 = sbr.rel (0) target = $region49
    $region48: #{tpu_custom_call.1} parent=1 // pred_region
      %s374 = ssub.s32 128, 128
      %375 = vsyncadd [#allocation4], %s374
      %s377 = sshll.u32 [#allocation10], 4
      %s378 = int_to_ptr.vmem [resolvable:$true] %s377
      %380 = dma.vmem_to_hbm [thread:$0]  %s378, 128, %s7, [#allocation4]
    $region49: #{tpu_custom_call.1} parent=1 // pred_fallthru
      _
    // Predicated region
    $region50: #{tpu_custom_call.1} parent=1 // pred_check
      _
    $region51: #{tpu_custom_call.1} parent=1 // pred_check_branch
      %382 = sbr.rel (0) target = $region53
    $region52: #{tpu_custom_call.1} parent=1 // pred_region
      %383 = dma.done [#allocation4], 128
    $region53: #{tpu_custom_call.1} parent=1 // pred_fallthru
      _
    %384 = vsyncpa [#allocation3], 1
    %385 = vsyncpa [#allocation6], 1
    %386 = vsyncpa [#allocation9], 1
    %387 = vsyncpa [#allocation4], 1

</llo_original>
